<compile_context>
chip_gen: v7x
topology: tpu7x:2x2x1
jax: 0.10.0
libtpu: 0.0.40
codegen_flags: <defaults>
</compile_context>

<pallas_src>
import jax
import jax.numpy as jnp
from jax.experimental import pallas as pl
from jax.experimental.pallas import tpu as pltpu


def _cdiv(a, b):
    return -(-a // b)


def _round_up(a, m):
    return ((a + m - 1) // m) * m


def _chip_info():
    """Best-effort TPU-generation detection; conservative defaults on failure."""
    kind = ""
    try:
        kind = jax.devices()[0].device_kind.lower()
    except Exception:
        pass
    is_v7 = "v7" in kind
    is_v5 = "v5" in kind
    # Physical VMEM per TensorCore: v7x = 64 MiB, v5e/v6e = 128 MiB.
    phys_vmem = (64 if is_v7 else 128) * 2**20
    return is_v7, is_v5, phys_vmem


def _make_kernel(use_sigmoid: bool, compute_dtype):
    def kernel(mask_ref, x_ref, out_ref):
        # Mask tile is (1, tile_cols); the sigmoid is tiny EUP work riding a
        # free VLIW slot under the HBM stall.  With the column axis outermost
        # in the grid its block index is constant across the inner row sweep,
        # so Pallas does not re-DMA it per step.
        m = mask_ref[...].astype(jnp.float32)
        fm = jax.nn.sigmoid(m) if use_sigmoid else m
        fm = fm.astype(compute_dtype)
        # Multiply in the chip-native dtype (bf16 on v6e/v7x, f32 on v5e which
        # has no bf16 VALU), broadcast over rows on the VPU, store in x.dtype.
        out_ref[...] = (x_ref[...].astype(compute_dtype) * fm).astype(out_ref.dtype)
    return kernel


def _pick_tiles(N, D, itemsize, target_block_bytes, sub, is_v7x):
    """Choose (tile_rows, tile_cols) for a memory-bound streaming kernel."""
    # Columns: keep the full feature dim (lane-dense) unless even `sub` rows of
    # it blow the block budget AND it is 128-aligned (a block's last dim must
    # be a multiple of 128 or equal to the full D).
    if D % 128 != 0 or sub * D * itemsize <= target_block_bytes:
        tile_cols = D
    else:
        tile_cols = max(128, (target_block_bytes // (sub * itemsize)) // 128 * 128)

    # Rows: fill the byte budget; multiple of the dtype's sublane-packing
    # factor (8 f32 / 16 bf16 / 32 int8), or the full N (always a legal block).
    rows = max(sub, (target_block_bytes // (tile_cols * itemsize)) // sub * sub)
    tile_rows = N if rows >= N else rows

    # Megacore split: only v7x has 2 TensorCores.  On v5e/v6e the grid is a
    # serial loop, so splitting only adds ~0.35 us per extra grid step.
    if is_v7x:
        min_block_bytes = 2 * 1024 * 1024   # ~1.3 us of HBM stream at 3.2 TB/s
        col_blocks = _cdiv(D, tile_cols)
        n_blocks = _cdiv(N, tile_rows) * col_blocks
        if n_blocks < 4:
            for nb in (4, 2):               # even block counts only
                row_blocks = max(1, nb // col_blocks)
                cand_rows = _round_up(_cdiv(N, row_blocks), sub)
                if (cand_rows < N
                        and cand_rows * tile_cols * itemsize >= min_block_bytes
                        and _cdiv(N, cand_rows) * col_blocks >= nb):
                    tile_rows = cand_rows
                    break

    return tile_rows, tile_cols


def explain_module_forward(x, feat_mask, *, use_sigmoid=True,
                           tile_rows=None, tile_cols=None,
                           target_block_bytes=None,
                           donate_x=False):
    """Pallas version of ExplainModule.forward default path: x * sigmoid(feat_mask).

    x:         [N, D] node features (any float dtype; output keeps this dtype).
    feat_mask: [D]    learned per-feature mask (float32 nn.Parameter in torch).
    """
    orig_shape = x.shape
    N, D = x.shape
    itemsize = jnp.dtype(x.dtype).itemsize

    is_v7x, is_v5, phys_vmem = _chip_info()

    # Streaming block budget: 8 MiB on v5e/v6e (128 MiB VMEM), 4 MiB on v7x
    # (64 MiB VMEM; 3.2 TB/s HBM keeps the pipe full with smaller blocks).
    if target_block_bytes is None:
        target_block_bytes = (4 if is_v7x else 8) * 1024 * 1024

    # Lane-dense output for narrow feature dims: an output last dim below 128
    # forces masked vst.msk partial stores (biggest single lever on the store
    # path).  When D divides 128 and N*D is 128-divisible, view x as
    # (N*D/128, 128) and tile the mask — pure layout plumbing.
    reshaped = False
    if D < 128 and 128 % D == 0 and (N * D) % 128 == 0:
        reps = 128 // D
        x = x.reshape(N * D // 128, 128)
        feat_mask = jnp.tile(feat_mask, reps)
        N, D = x.shape
        reshaped = True

    # bf16 computes natively on v6e/v7x; widen to f32 only on v5e or f32 input.
    if (not is_v5) and x.dtype == jnp.bfloat16:
        compute_dtype = jnp.bfloat16
    else:
        compute_dtype = jnp.float32

    # Sublane-packing multiple for the dtype (8 f32, 16 bf16, 32 int8/fp8).
    sub = max(8, 32 // itemsize)

    auto_rows, auto_cols = _pick_tiles(N, D, itemsize, target_block_bytes, sub, is_v7x)
    tile_rows = auto_rows if tile_rows is None else min(tile_rows, N)
    tile_cols = auto_cols if tile_cols is None else min(tile_cols, D)

    # The learned mask is a float32 parameter in the reference module; carry it
    # as a [1, D] lane-dense f32 tile (keeps sigmoid precision) broadcast over
    # the row (sublane) axis inside the kernel.
    mask2d = feat_mask.reshape(1, D).astype(jnp.float32)

    # Ceiling-divide grid; COLUMN axis outermost so the mask block index is
    # constant across the whole inner row sweep (no per-step mask re-fetch).
    grid = (_cdiv(D, tile_cols), _cdiv(N, tile_rows))

    block_bytes = tile_rows * tile_cols * itemsize
    mask_bytes = 2 * tile_cols * 4
    # Actual need: 2 double-buffered x blocks + 2 output blocks + mask + slack.
    # This is a limit, not a reservation; never below the requirement, and
    # capped below physical VMEM with headroom for Mosaic internal scratch.
    need = 4 * block_bytes + 2 * mask_bytes + (2 << 20)
    vmem_limit = int(min(phys_vmem - 8 * 2**20, max(32 * 2**20, need)))

    out = pl.pallas_call(
        _make_kernel(use_sigmoid, compute_dtype),
        out_shape=jax.ShapeDtypeStruct((N, D), x.dtype),
        grid_spec=pltpu.PrefetchScalarGridSpec(
            num_scalar_prefetch=0,
            grid=grid,                                                       # (cols, rows)
            in_specs=[
                pl.BlockSpec((1, tile_cols), lambda j, i: (0, j)),           # feat_mask
                pl.BlockSpec((tile_rows, tile_cols), lambda j, i: (i, j)),   # x tile
            ],
            out_specs=pl.BlockSpec((tile_rows, tile_cols), lambda j, i: (i, j)),
        ),
        compiler_params=pltpu.CompilerParams(
            dimension_semantics=("parallel", "parallel"),
            vmem_limit_bytes=vmem_limit,
        ),
        input_output_aliases=({1: 0} if donate_x else {}),
    )(mask2d, x)

    if reshaped:
        out = out.reshape(orig_shape)
    return out


def _init_x_like_module(x):
    # __init__ preprocessing, faithful to the torch code: if ANY row-sum is zero,
    # add 1e-6 to the ENTIRE matrix (that is what `if (x.sum(1)==0).sum()>0:
    # x = x + 1e-06` does — global add, keyed on row-sum == 0).
    has_zero_row = jnp.any(jnp.sum(x, axis=1) == 0)
    return jnp.where(has_zero_row, x + 1e-6, x)


if __name__ == "__main__":
    key = jax.random.PRNGKey(0)

    cases = [
        # (name,                       N,    D,   dtype,        extra kwargs)
        ("f32 auto-tiled",             1024, 256, jnp.float32,  {}),
        ("f32 full-dim, D not 128k",   300,  200, jnp.float32,  {}),
        ("bf16 multi-block ragged",    1000, 256, jnp.bfloat16, dict(tile_rows=256, tile_cols=128)),
        ("f32 narrow-D lane-dense",    256,  64,  jnp.float32,  {}),
        ("f32 donate_x",               512,  128, jnp.float32,  dict(donate_x=True)),
        ("f32 no sigmoid",             256,  128, jnp.float32,  dict(use_sigmoid=False)),
        ("bf16 auto-tiled",            512,  128, jnp.bfloat16, {}),
    ]

    for idx, (name, N, D, dtype, kw) in enumerate(cases):
        kx, km = jax.random.split(jax.random.fold_in(key, idx))
        x = jax.random.normal(kx, (N, D), dtype=jnp.float32).astype(dtype)
        # construct_feat_mask(..., init_strategy='seed') -> feat_mask = seed_mask
        seed_mask = 1.0 + 0.1 * jax.random.normal(km, (D,), dtype=jnp.float32)
        x = _init_x_like_module(x)

        use_sig = kw.get("use_sigmoid", True)
        fm = jax.nn.sigmoid(seed_mask) if use_sig else seed_mask
        ref = (x.astype(jnp.float32) * fm[None, :]).astype(dtype)   # before any donation

        feat = explain_module_forward(x, seed_mask, **kw)
        feat = jax.block_until_ready(feat)

        assert feat.shape == ref.shape and feat.dtype == ref.dtype, f"shape/dtype mismatch in '{name}'"
        tol = 1e-5 if dtype == jnp.float32 else 2e-2
        assert jnp.allclose(feat.astype(jnp.float32), ref.astype(jnp.float32),
                            atol=tol, rtol=tol), f"numeric mismatch in case '{name}'"

    # TODO(synk): `sp.csr_matrix` / `dgl.from_scipy` graph construction and the
    # pretrained GNN call `model.explain_pred2(graph, feat)` are external,
    # data-dependent components with no Pallas equivalent; the kernel returns
    # the masked feature matrix `feat` that would be fed to the model.

    print("KERNEL_OK")
</pallas_src>

<mosaic_0001>
module attributes {stable_mosaic.version = 11 : i64} {
  func.func @kernel(%arg0: i32, %arg1: i32, %arg2: memref<1x256xf32, #tpu.memory_space<vmem>>, %arg3: memref<1024x256xf32, #tpu.memory_space<vmem>>, %arg4: memref<1024x256xf32, #tpu.memory_space<vmem>>) attributes {dimension_semantics = [#tpu.dimension_semantics<parallel>, #tpu.dimension_semantics<parallel>], iteration_bounds = array<i64: 1, 1>, scalar_prefetch = 0 : i64, scratch_operands = 0 : i64, tpu.core_type = #tpu.core_type<tc>, window_params = [{transform_indices = @transform_0, window_bounds = array<i64: 1, 256>}, {transform_indices = @transform_1, window_bounds = array<i64: 1024, 256>}, {transform_indices = @transform_2, window_bounds = array<i64: 1024, 256>}]} {
    %c0 = arith.constant 0 : index
    %c0_0 = arith.constant 0 : index
    %0 = vector.load %arg2[%c0, %c0_0] : memref<1x256xf32, #tpu.memory_space<vmem>>, vector<1x256xf32>
    %1 = arith.negf %0 : vector<1x256xf32>
    %2 = math.exp %1 : vector<1x256xf32>
    %cst = arith.constant 1.000000e+00 : f32
    %3 = vector.broadcast %cst : f32 to vector<1x256xf32>
    %4 = arith.addf %3, %2 : vector<1x256xf32>
    %5 = arith.divf %3, %4 : vector<1x256xf32>
    %c0_1 = arith.constant 0 : index
    %c0_2 = arith.constant 0 : index
    %6 = vector.load %arg3[%c0_1, %c0_2] : memref<1024x256xf32, #tpu.memory_space<vmem>>, vector<1024x256xf32>
    %7 = vector.broadcast %5 : vector<1x256xf32> to vector<1024x256xf32>
    %8 = arith.mulf %6, %7 : vector<1024x256xf32>
    %c0_3 = arith.constant 0 : index
    %c0_4 = arith.constant 0 : index
    %9 = vector.load %arg4[%c0_3, %c0_4] : memref<1024x256xf32, #tpu.memory_space<vmem>>, vector<1024x256xf32>
    tpu.vector_store %arg4[%c0_3, %c0_4], %8 {strides = array<i32>} : memref<1024x256xf32, #tpu.memory_space<vmem>>, vector<1024x256xf32>,
    return
  }
  func.func @transform_0(%arg0: i32, %arg1: i32) -> (i32, i32) {
    %c0_i32 = arith.constant 0 : i32
    %c0_i32_0 = arith.constant 0 : i32
    return %c0_i32, %arg0 : i32, i32
  }
  func.func @transform_1(%arg0: i32, %arg1: i32) -> (i32, i32) {
    %c0_i32 = arith.constant 0 : i32
    return %arg1, %arg0 : i32, i32
  }
  func.func @transform_2(%arg0: i32, %arg1: i32) -> (i32, i32) {
    %c0_i32 = arith.constant 0 : i32
    return %arg1, %arg0 : i32, i32
  }
}

</mosaic_0001>

<llo_original>
// kernel: tpu_custom_call.1
$region0: #{tpu_custom_call.1}
  #allocation0 [shape = 'u32[]', space=smem, size = 0x4, offset = 0x4, fixed_abs, tag = 'smem constant byte address 0x4 - core index']
  #allocation1 [shape = 'u32[144,128]{1,0:T(1,128)}', space=vmem, size = 0x12000, scoped, tag = 'internal scratch']
  %s0 = inlined_call_operand.hbm [shape: f32[1,256], index: 0, kind: input, shape index: {}]
  %s1 = inlined_call_operand.hbm [shape: f32[1024,256], index: 1, kind: input, shape index: {}]
  %s2 = inlined_call_operand.hbm [shape: f32[1024,256], index: 2, kind: output, shape index: {}]
  %s3 = sld [smem:[#allocation0]]
  $region26: #{tpu_custom_call.1} parent=0
    _
  %s5 = ssub.s32 1, %s3
  %s6 = scalar_select 0, %s5, %s3
  $region1: #{tpu_custom_call.1} parent=0
    #allocation2 [shape = 'u8[1024]{0}', space=vmem, size = 0x400, scoped, tag = 'input window, operand 0, single buffered']
    #allocation3 [shape = 's32[1]{0}', space=sflag, size = 0x4, scoped, tag = 'scoped memory for tpu_custom_call.1']
    #allocation4 [shape = 's32[1]{0}', space=sflag, size = 0x4, scoped, tag = 'scoped memory for tpu_custom_call.1']
    #allocation5 [shape = 'u8[1048576]{0}', space=vmem, size = 0x100000, scoped, tag = 'input window, operand 1, single buffered']
    #allocation6 [shape = 's32[1]{0}', space=sflag, size = 0x4, scoped, tag = 'scoped memory for tpu_custom_call.1']
    #allocation7 [shape = 'u8[1048576]{0}', space=vmem, size = 0x100000, scoped, tag = 'output window, operand 0, single buffered']
    %7 = vsyncpa [#allocation3], 0
    %8 = vsyncpa [#allocation6], 0
    %9 = vsyncpa [#allocation4], 0
    // Predicated region
    $region2: #{tpu_custom_call.1} parent=1 // pred_check
      _
    $region3: #{tpu_custom_call.1} parent=1 // pred_check_branch
      %11 = sbr.rel (0) target = $region5
    $region4: #{tpu_custom_call.1} parent=1 // pred_region
      %s13 = ssub.s32 32, 32
      %14 = vsyncadd [#allocation3], %s13
      %s16 = sshll.u32 [#allocation2], 4
      %s17 = int_to_ptr.vmem [resolvable:$true] %s16
      %19 = dma.hbm_to_vmem [thread:$0]  %s0, 32, %s17, [#allocation3]
    $region5: #{tpu_custom_call.1} parent=1 // pred_fallthru
      _
    // Predicated region
    $region6: #{tpu_custom_call.1} parent=1 // pred_check
      _
    $region7: #{tpu_custom_call.1} parent=1 // pred_check_branch
      %21 = sbr.rel (0) target = $region9
    $region8: #{tpu_custom_call.1} parent=1 // pred_region
      %s23 = ssub.s32 32768, 32768
      %24 = vsyncadd [#allocation6], %s23
      %s25 = sshll.u32 [#allocation5], 4
      %s26 = int_to_ptr.vmem [resolvable:$true] %s25
      %31 = dma.hbm_to_vmem [thread:$0]  %s1, 32768, %s26, [#allocation6], 256, 256, 16
    $region9: #{tpu_custom_call.1} parent=1 // pred_fallthru
      _
    // Predicated region
    $region10: #{tpu_custom_call.1} parent=1 // pred_check
      _
    $region11: #{tpu_custom_call.1} parent=1 // pred_check_branch
      %33 = sbr.rel (0) target = $region13
    $region12: #{tpu_custom_call.1} parent=1 // pred_region
      %34 = dma.done [#allocation3], 32
    $region13: #{tpu_custom_call.1} parent=1 // pred_fallthru
      _
    // Predicated region
    $region14: #{tpu_custom_call.1} parent=1 // pred_check
      _
    $region15: #{tpu_custom_call.1} parent=1 // pred_check_branch
      %36 = sbr.rel (0) target = $region17
    $region16: #{tpu_custom_call.1} parent=1 // pred_region
      %37 = dma.done [#allocation6], 32768
    $region17: #{tpu_custom_call.1} parent=1 // pred_fallthru
      _
    %v38 = vld [vmem:[#allocation2] sm:$0x3]
    %v39 = vxor.u32 %v38, 2147483648
    %v40 = vmul.f32 %v39, 1.442695
    %v41 = vpow.pop %v40
    %v42 = vadd.f32 %v41, 1.0
    %v43 = vrcp.pop %v42
    %v44 = vmul.f32 1.0, %v43
    %v45 = vld [vmem:[#allocation5] sm:$0xff]
    %v46 = vld [vmem:[#allocation5 + $0x8] sm:$0xff]
    %v47 = vld [vmem:[#allocation5 + $0x10] sm:$0xff]
    %v48 = vld [vmem:[#allocation5 + $0x18] sm:$0xff]
    %v49 = vld [vmem:[#allocation5 + $0x20] sm:$0xff]
    %v50 = vld [vmem:[#allocation5 + $0x28] sm:$0xff]
    %v51 = vld [vmem:[#allocation5 + $0x30] sm:$0xff]
    %v52 = vld [vmem:[#allocation5 + $0x38] sm:$0xff]
    %v53 = vld [vmem:[#allocation5 + $0x40] sm:$0xff]
    %v54 = vld [vmem:[#allocation5 + $0x48] sm:$0xff]
    %v55 = vld [vmem:[#allocation5 + $0x50] sm:$0xff]
    %v56 = vld [vmem:[#allocation5 + $0x58] sm:$0xff]
    %v57 = vld [vmem:[#allocation5 + $0x60] sm:$0xff]
    %v58 = vld [vmem:[#allocation5 + $0x68] sm:$0xff]
    %v59 = vld [vmem:[#allocation5 + $0x70] sm:$0xff]
    %v60 = vld [vmem:[#allocation5 + $0x78] sm:$0xff]
    %v61 = vld [vmem:[#allocation5 + $0x80] sm:$0xff]
    %v62 = vld [vmem:[#allocation5 + $0x88] sm:$0xff]
    %v63 = vld [vmem:[#allocation5 + $0x90] sm:$0xff]
    %v64 = vld [vmem:[#allocation5 + $0x98] sm:$0xff]
    %v65 = vld [vmem:[#allocation5 + $0xa0] sm:$0xff]
    %v66 = vld [vmem:[#allocation5 + $0xa8] sm:$0xff]
    %v67 = vld [vmem:[#allocation5 + $0xb0] sm:$0xff]
    %v68 = vld [vmem:[#allocation5 + $0xb8] sm:$0xff]
    %v69 = vld [vmem:[#allocation5 + $0xc0] sm:$0xff]
    %v70 = vld [vmem:[#allocation5 + $0xc8] sm:$0xff]
    %v71 = vld [vmem:[#allocation5 + $0xd0] sm:$0xff]
    %v72 = vld [vmem:[#allocation5 + $0xd8] sm:$0xff]
    %v73 = vld [vmem:[#allocation5 + $0xe0] sm:$0xff]
    %v74 = vld [vmem:[#allocation5 + $0xe8] sm:$0xff]
    %v75 = vld [vmem:[#allocation5 + $0xf0] sm:$0xff]
    %v76 = vld [vmem:[#allocation5 + $0xf8] sm:$0xff]
    %v77 = vld [vmem:[#allocation5 + $0x100] sm:$0xff]
    %v78 = vld [vmem:[#allocation5 + $0x108] sm:$0xff]
    %v79 = vld [vmem:[#allocation5 + $0x110] sm:$0xff]
    %v80 = vld [vmem:[#allocation5 + $0x118] sm:$0xff]
    %v81 = vld [vmem:[#allocation5 + $0x120] sm:$0xff]
    %v82 = vld [vmem:[#allocation5 + $0x128] sm:$0xff]
    %v83 = vld [vmem:[#allocation5 + $0x130] sm:$0xff]
    %v84 = vld [vmem:[#allocation5 + $0x138] sm:$0xff]
    %v85 = vld [vmem:[#allocation5 + $0x140] sm:$0xff]
    %v86 = vld [vmem:[#allocation5 + $0x148] sm:$0xff]
    %v87 = vld [vmem:[#allocation5 + $0x150] sm:$0xff]
    %v88 = vld [vmem:[#allocation5 + $0x158] sm:$0xff]
    %v89 = vld [vmem:[#allocation5 + $0x160] sm:$0xff]
    %v90 = vld [vmem:[#allocation5 + $0x168] sm:$0xff]
    %v91 = vld [vmem:[#allocation5 + $0x170] sm:$0xff]
    %v92 = vld [vmem:[#allocation5 + $0x178] sm:$0xff]
    %v93 = vld [vmem:[#allocation5 + $0x180] sm:$0xff]
    %v94 = vld [vmem:[#allocation5 + $0x188] sm:$0xff]
    %v95 = vld [vmem:[#allocation5 + $0x190] sm:$0xff]
    %v96 = vld [vmem:[#allocation5 + $0x198] sm:$0xff]
    %v97 = vld [vmem:[#allocation5 + $0x1a0] sm:$0xff]
    %v98 = vld [vmem:[#allocation5 + $0x1a8] sm:$0xff]
    %v99 = vld [vmem:[#allocation5 + $0x1b0] sm:$0xff]
    %v100 = vld [vmem:[#allocation5 + $0x1b8] sm:$0xff]
    %v101 = vld [vmem:[#allocation5 + $0x1c0] sm:$0xff]
    %v102 = vld [vmem:[#allocation5 + $0x1c8] sm:$0xff]
    %v103 = vld [vmem:[#allocation5 + $0x1d0] sm:$0xff]
    %v104 = vld [vmem:[#allocation5 + $0x1d8] sm:$0xff]
    %v105 = vld [vmem:[#allocation5 + $0x1e0] sm:$0xff]
    %v106 = vld [vmem:[#allocation5 + $0x1e8] sm:$0xff]
    %v107 = vld [vmem:[#allocation5 + $0x1f0] sm:$0xff]
    %v108 = vld [vmem:[#allocation5 + $0x1f8] sm:$0xff]
    %v109 = vld [vmem:[#allocation5 + $0x200] sm:$0xff]
    %v110 = vld [vmem:[#allocation5 + $0x208] sm:$0xff]
    %v111 = vld [vmem:[#allocation5 + $0x210] sm:$0xff]
    %v112 = vld [vmem:[#allocation5 + $0x218] sm:$0xff]
    %v113 = vld [vmem:[#allocation5 + $0x220] sm:$0xff]
    %v114 = vld [vmem:[#allocation5 + $0x228] sm:$0xff]
    %v115 = vld [vmem:[#allocation5 + $0x230] sm:$0xff]
    %v116 = vld [vmem:[#allocation5 + $0x238] sm:$0xff]
    %v117 = vld [vmem:[#allocation5 + $0x240] sm:$0xff]
    %v118 = vld [vmem:[#allocation5 + $0x248] sm:$0xff]
    %v119 = vld [vmem:[#allocation5 + $0x250] sm:$0xff]
    %v120 = vld [vmem:[#allocation5 + $0x258] sm:$0xff]
    %v121 = vld [vmem:[#allocation5 + $0x260] sm:$0xff]
    %v122 = vld [vmem:[#allocation5 + $0x268] sm:$0xff]
    %v123 = vld [vmem:[#allocation5 + $0x270] sm:$0xff]
    %v124 = vld [vmem:[#allocation5 + $0x278] sm:$0xff]
    %v125 = vld [vmem:[#allocation5 + $0x280] sm:$0xff]
    %v126 = vld [vmem:[#allocation5 + $0x288] sm:$0xff]
    %v127 = vld [vmem:[#allocation5 + $0x290] sm:$0xff]
    %v128 = vld [vmem:[#allocation5 + $0x298] sm:$0xff]
    %v129 = vld [vmem:[#allocation5 + $0x2a0] sm:$0xff]
    %v130 = vld [vmem:[#allocation5 + $0x2a8] sm:$0xff]
    %v131 = vld [vmem:[#allocation5 + $0x2b0] sm:$0xff]
    %v132 = vld [vmem:[#allocation5 + $0x2b8] sm:$0xff]
    %v133 = vld [vmem:[#allocation5 + $0x2c0] sm:$0xff]
    %v134 = vld [vmem:[#allocation5 + $0x2c8] sm:$0xff]
    %v135 = vld [vmem:[#allocation5 + $0x2d0] sm:$0xff]
    %v136 = vld [vmem:[#allocation5 + $0x2d8] sm:$0xff]
    %v137 = vld [vmem:[#allocation5 + $0x2e0] sm:$0xff]
    %v138 = vld [vmem:[#allocation5 + $0x2e8] sm:$0xff]
    %v139 = vld [vmem:[#allocation5 + $0x2f0] sm:$0xff]
    %v140 = vld [vmem:[#allocation5 + $0x2f8] sm:$0xff]
    %v141 = vld [vmem:[#allocation5 + $0x300] sm:$0xff]
    %v142 = vld [vmem:[#allocation5 + $0x308] sm:$0xff]
    %v143 = vld [vmem:[#allocation5 + $0x310] sm:$0xff]
    %v144 = vld [vmem:[#allocation5 + $0x318] sm:$0xff]
    %v145 = vld [vmem:[#allocation5 + $0x320] sm:$0xff]
    %v146 = vld [vmem:[#allocation5 + $0x328] sm:$0xff]
    %v147 = vld [vmem:[#allocation5 + $0x330] sm:$0xff]
    %v148 = vld [vmem:[#allocation5 + $0x338] sm:$0xff]
    %v149 = vld [vmem:[#allocation5 + $0x340] sm:$0xff]
    %v150 = vld [vmem:[#allocation5 + $0x348] sm:$0xff]
    %v151 = vld [vmem:[#allocation5 + $0x350] sm:$0xff]
    %v152 = vld [vmem:[#allocation5 + $0x358] sm:$0xff]
    %v153 = vld [vmem:[#allocation5 + $0x360] sm:$0xff]
    %v154 = vld [vmem:[#allocation5 + $0x368] sm:$0xff]
    %v155 = vld [vmem:[#allocation5 + $0x370] sm:$0xff]
    %v156 = vld [vmem:[#allocation5 + $0x378] sm:$0xff]
    %v157 = vld [vmem:[#allocation5 + $0x380] sm:$0xff]
    %v158 = vld [vmem:[#allocation5 + $0x388] sm:$0xff]
    %v159 = vld [vmem:[#allocation5 + $0x390] sm:$0xff]
    %v160 = vld [vmem:[#allocation5 + $0x398] sm:$0xff]
    %v161 = vld [vmem:[#allocation5 + $0x3a0] sm:$0xff]
    %v162 = vld [vmem:[#allocation5 + $0x3a8] sm:$0xff]
    %v163 = vld [vmem:[#allocation5 + $0x3b0] sm:$0xff]
    %v164 = vld [vmem:[#allocation5 + $0x3b8] sm:$0xff]
    %v165 = vld [vmem:[#allocation5 + $0x3c0] sm:$0xff]
    %v166 = vld [vmem:[#allocation5 + $0x3c8] sm:$0xff]
    %v167 = vld [vmem:[#allocation5 + $0x3d0] sm:$0xff]
    %v168 = vld [vmem:[#allocation5 + $0x3d8] sm:$0xff]
    %v169 = vld [vmem:[#allocation5 + $0x3e0] sm:$0xff]
    %v170 = vld [vmem:[#allocation5 + $0x3e8] sm:$0xff]
    %v171 = vld [vmem:[#allocation5 + $0x3f0] sm:$0xff]
    %v172 = vld [vmem:[#allocation5 + $0x3f8] sm:$0xff]
    %v173 = vld [vmem:[#allocation5 + $0x400] sm:$0xff]
    %v174 = vld [vmem:[#allocation5 + $0x408] sm:$0xff]
    %v175 = vld [vmem:[#allocation5 + $0x410] sm:$0xff]
    %v176 = vld [vmem:[#allocation5 + $0x418] sm:$0xff]
    %v177 = vld [vmem:[#allocation5 + $0x420] sm:$0xff]
    %v178 = vld [vmem:[#allocation5 + $0x428] sm:$0xff]
    %v179 = vld [vmem:[#allocation5 + $0x430] sm:$0xff]
    %v180 = vld [vmem:[#allocation5 + $0x438] sm:$0xff]
    %v181 = vld [vmem:[#allocation5 + $0x440] sm:$0xff]
    %v182 = vld [vmem:[#allocation5 + $0x448] sm:$0xff]
    %v183 = vld [vmem:[#allocation5 + $0x450] sm:$0xff]
    %v184 = vld [vmem:[#allocation5 + $0x458] sm:$0xff]
    %v185 = vld [vmem:[#allocation5 + $0x460] sm:$0xff]
    %v186 = vld [vmem:[#allocation5 + $0x468] sm:$0xff]
    %v187 = vld [vmem:[#allocation5 + $0x470] sm:$0xff]
    %v188 = vld [vmem:[#allocation5 + $0x478] sm:$0xff]
    %v189 = vld [vmem:[#allocation5 + $0x480] sm:$0xff]
    %v190 = vld [vmem:[#allocation5 + $0x488] sm:$0xff]
    %v191 = vld [vmem:[#allocation5 + $0x490] sm:$0xff]
    %v192 = vld [vmem:[#allocation5 + $0x498] sm:$0xff]
    %v193 = vld [vmem:[#allocation5 + $0x4a0] sm:$0xff]
    %v194 = vld [vmem:[#allocation5 + $0x4a8] sm:$0xff]
    %v195 = vld [vmem:[#allocation5 + $0x4b0] sm:$0xff]
    %v196 = vld [vmem:[#allocation5 + $0x4b8] sm:$0xff]
    %v197 = vld [vmem:[#allocation5 + $0x4c0] sm:$0xff]
    %v198 = vld [vmem:[#allocation5 + $0x4c8] sm:$0xff]
    %v199 = vld [vmem:[#allocation5 + $0x4d0] sm:$0xff]
    %v200 = vld [vmem:[#allocation5 + $0x4d8] sm:$0xff]
    %v201 = vld [vmem:[#allocation5 + $0x4e0] sm:$0xff]
    %v202 = vld [vmem:[#allocation5 + $0x4e8] sm:$0xff]
    %v203 = vld [vmem:[#allocation5 + $0x4f0] sm:$0xff]
    %v204 = vld [vmem:[#allocation5 + $0x4f8] sm:$0xff]
    %v205 = vld [vmem:[#allocation5 + $0x500] sm:$0xff]
    %v206 = vld [vmem:[#allocation5 + $0x508] sm:$0xff]
    %v207 = vld [vmem:[#allocation5 + $0x510] sm:$0xff]
    %v208 = vld [vmem:[#allocation5 + $0x518] sm:$0xff]
    %v209 = vld [vmem:[#allocation5 + $0x520] sm:$0xff]
    %v210 = vld [vmem:[#allocation5 + $0x528] sm:$0xff]
    %v211 = vld [vmem:[#allocation5 + $0x530] sm:$0xff]
    %v212 = vld [vmem:[#allocation5 + $0x538] sm:$0xff]
    %v213 = vld [vmem:[#allocation5 + $0x540] sm:$0xff]
    %v214 = vld [vmem:[#allocation5 + $0x548] sm:$0xff]
    %v215 = vld [vmem:[#allocation5 + $0x550] sm:$0xff]
    %v216 = vld [vmem:[#allocation5 + $0x558] sm:$0xff]
    %v217 = vld [vmem:[#allocation5 + $0x560] sm:$0xff]
    %v218 = vld [vmem:[#allocation5 + $0x568] sm:$0xff]
    %v219 = vld [vmem:[#allocation5 + $0x570] sm:$0xff]
    %v220 = vld [vmem:[#allocation5 + $0x578] sm:$0xff]
    %v221 = vld [vmem:[#allocation5 + $0x580] sm:$0xff]
    %v222 = vld [vmem:[#allocation5 + $0x588] sm:$0xff]
    %v223 = vld [vmem:[#allocation5 + $0x590] sm:$0xff]
    %v224 = vld [vmem:[#allocation5 + $0x598] sm:$0xff]
    %v225 = vld [vmem:[#allocation5 + $0x5a0] sm:$0xff]
    %v226 = vld [vmem:[#allocation5 + $0x5a8] sm:$0xff]
    %v227 = vld [vmem:[#allocation5 + $0x5b0] sm:$0xff]
    %v228 = vld [vmem:[#allocation5 + $0x5b8] sm:$0xff]
    %v229 = vld [vmem:[#allocation5 + $0x5c0] sm:$0xff]
    %v230 = vld [vmem:[#allocation5 + $0x5c8] sm:$0xff]
    %v231 = vld [vmem:[#allocation5 + $0x5d0] sm:$0xff]
    %v232 = vld [vmem:[#allocation5 + $0x5d8] sm:$0xff]
    %v233 = vld [vmem:[#allocation5 + $0x5e0] sm:$0xff]
    %v234 = vld [vmem:[#allocation5 + $0x5e8] sm:$0xff]
    %v235 = vld [vmem:[#allocation5 + $0x5f0] sm:$0xff]
    %v236 = vld [vmem:[#allocation5 + $0x5f8] sm:$0xff]
    %v237 = vld [vmem:[#allocation5 + $0x600] sm:$0xff]
    %v238 = vld [vmem:[#allocation5 + $0x608] sm:$0xff]
    %v239 = vld [vmem:[#allocation5 + $0x610] sm:$0xff]
    %v240 = vld [vmem:[#allocation5 + $0x618] sm:$0xff]
    %v241 = vld [vmem:[#allocation5 + $0x620] sm:$0xff]
    %v242 = vld [vmem:[#allocation5 + $0x628] sm:$0xff]
    %v243 = vld [vmem:[#allocation5 + $0x630] sm:$0xff]
    %v244 = vld [vmem:[#allocation5 + $0x638] sm:$0xff]
    %v245 = vld [vmem:[#allocation5 + $0x640] sm:$0xff]
    %v246 = vld [vmem:[#allocation5 + $0x648] sm:$0xff]
    %v247 = vld [vmem:[#allocation5 + $0x650] sm:$0xff]
    %v248 = vld [vmem:[#allocation5 + $0x658] sm:$0xff]
    %v249 = vld [vmem:[#allocation5 + $0x660] sm:$0xff]
    %v250 = vld [vmem:[#allocation5 + $0x668] sm:$0xff]
    %v251 = vld [vmem:[#allocation5 + $0x670] sm:$0xff]
    %v252 = vld [vmem:[#allocation5 + $0x678] sm:$0xff]
    %v253 = vld [vmem:[#allocation5 + $0x680] sm:$0xff]
    %v254 = vld [vmem:[#allocation5 + $0x688] sm:$0xff]
    %v255 = vld [vmem:[#allocation5 + $0x690] sm:$0xff]
    %v256 = vld [vmem:[#allocation5 + $0x698] sm:$0xff]
    %v257 = vld [vmem:[#allocation5 + $0x6a0] sm:$0xff]
    %v258 = vld [vmem:[#allocation5 + $0x6a8] sm:$0xff]
    %v259 = vld [vmem:[#allocation5 + $0x6b0] sm:$0xff]
    %v260 = vld [vmem:[#allocation5 + $0x6b8] sm:$0xff]
    %v261 = vld [vmem:[#allocation5 + $0x6c0] sm:$0xff]
    %v262 = vld [vmem:[#allocation5 + $0x6c8] sm:$0xff]
    %v263 = vld [vmem:[#allocation5 + $0x6d0] sm:$0xff]
    %v264 = vld [vmem:[#allocation5 + $0x6d8] sm:$0xff]
    %v265 = vld [vmem:[#allocation5 + $0x6e0] sm:$0xff]
    %v266 = vld [vmem:[#allocation5 + $0x6e8] sm:$0xff]
    %v267 = vld [vmem:[#allocation5 + $0x6f0] sm:$0xff]
    %v268 = vld [vmem:[#allocation5 + $0x6f8] sm:$0xff]
    %v269 = vld [vmem:[#allocation5 + $0x700] sm:$0xff]
    %v270 = vld [vmem:[#allocation5 + $0x708] sm:$0xff]
    %v271 = vld [vmem:[#allocation5 + $0x710] sm:$0xff]
    %v272 = vld [vmem:[#allocation5 + $0x718] sm:$0xff]
    %v273 = vld [vmem:[#allocation5 + $0x720] sm:$0xff]
    %v274 = vld [vmem:[#allocation5 + $0x728] sm:$0xff]
    %v275 = vld [vmem:[#allocation5 + $0x730] sm:$0xff]
    %v276 = vld [vmem:[#allocation5 + $0x738] sm:$0xff]
    %v277 = vld [vmem:[#allocation5 + $0x740] sm:$0xff]
    %v278 = vld [vmem:[#allocation5 + $0x748] sm:$0xff]
    %v279 = vld [vmem:[#allocation5 + $0x750] sm:$0xff]
    %v280 = vld [vmem:[#allocation5 + $0x758] sm:$0xff]
    %v281 = vld [vmem:[#allocation5 + $0x760] sm:$0xff]
    %v282 = vld [vmem:[#allocation5 + $0x768] sm:$0xff]
    %v283 = vld [vmem:[#allocation5 + $0x770] sm:$0xff]
    %v284 = vld [vmem:[#allocation5 + $0x778] sm:$0xff]
    %v285 = vld [vmem:[#allocation5 + $0x780] sm:$0xff]
    %v286 = vld [vmem:[#allocation5 + $0x788] sm:$0xff]
    %v287 = vld [vmem:[#allocation5 + $0x790] sm:$0xff]
    %v288 = vld [vmem:[#allocation5 + $0x798] sm:$0xff]
    %v289 = vld [vmem:[#allocation5 + $0x7a0] sm:$0xff]
    %v290 = vld [vmem:[#allocation5 + $0x7a8] sm:$0xff]
    %v291 = vld [vmem:[#allocation5 + $0x7b0] sm:$0xff]
    %v292 = vld [vmem:[#allocation5 + $0x7b8] sm:$0xff]
    %v293 = vld [vmem:[#allocation5 + $0x7c0] sm:$0xff]
    %v294 = vld [vmem:[#allocation5 + $0x7c8] sm:$0xff]
    %v295 = vld [vmem:[#allocation5 + $0x7d0] sm:$0xff]
    %v296 = vld [vmem:[#allocation5 + $0x7d8] sm:$0xff]
    %v297 = vld [vmem:[#allocation5 + $0x7e0] sm:$0xff]
    %v298 = vld [vmem:[#allocation5 + $0x7e8] sm:$0xff]
    %v299 = vld [vmem:[#allocation5 + $0x7f0] sm:$0xff]
    %v300 = vld [vmem:[#allocation5 + $0x7f8] sm:$0xff]
    %v302 = vlaneseq
    %v303 = vshrl.u32 %v302, 7
    %v304 = vsub.s32 0, %v303
    %v305 = vrot.slane %v44, %v304
    %v306 = vlaneseq
    %v307 = vshrl.u32 %v306, 7
    %v308 = vsub.s32 1, %v307
    %v309 = vrot.slane %v44, %v308
    %v312 = vmul.f32 %v45, %v305
    %v313 = vmul.f32 %v46, %v309
    %v314 = vmul.f32 %v47, %v305
    %v315 = vmul.f32 %v48, %v309
    %v316 = vmul.f32 %v49, %v305
    %v317 = vmul.f32 %v50, %v309
    %v318 = vmul.f32 %v51, %v305
    %v319 = vmul.f32 %v52, %v309
    %v320 = vmul.f32 %v53, %v305
    %v321 = vmul.f32 %v54, %v309
    %v322 = vmul.f32 %v55, %v305
    %v323 = vmul.f32 %v56, %v309
    %v324 = vmul.f32 %v57, %v305
    %v325 = vmul.f32 %v58, %v309
    %v326 = vmul.f32 %v59, %v305
    %v327 = vmul.f32 %v60, %v309
    %v328 = vmul.f32 %v61, %v305
    %v329 = vmul.f32 %v62, %v309
    %v330 = vmul.f32 %v63, %v305
    %v331 = vmul.f32 %v64, %v309
    %v332 = vmul.f32 %v65, %v305
    %v333 = vmul.f32 %v66, %v309
    %v334 = vmul.f32 %v67, %v305
    %v335 = vmul.f32 %v68, %v309
    %v336 = vmul.f32 %v69, %v305
    %v337 = vmul.f32 %v70, %v309
    %v338 = vmul.f32 %v71, %v305
    %v339 = vmul.f32 %v72, %v309
    %v340 = vmul.f32 %v73, %v305
    %v341 = vmul.f32 %v74, %v309
    %v342 = vmul.f32 %v75, %v305
    %v343 = vmul.f32 %v76, %v309
    %v344 = vmul.f32 %v77, %v305
    %v345 = vmul.f32 %v78, %v309
    %v346 = vmul.f32 %v79, %v305
    %v347 = vmul.f32 %v80, %v309
    %v348 = vmul.f32 %v81, %v305
    %v349 = vmul.f32 %v82, %v309
    %v350 = vmul.f32 %v83, %v305
    %v351 = vmul.f32 %v84, %v309
    %v352 = vmul.f32 %v85, %v305
    %v353 = vmul.f32 %v86, %v309
    %v354 = vmul.f32 %v87, %v305
    %v355 = vmul.f32 %v88, %v309
    %v356 = vmul.f32 %v89, %v305
    %v357 = vmul.f32 %v90, %v309
    %v358 = vmul.f32 %v91, %v305
    %v359 = vmul.f32 %v92, %v309
    %v360 = vmul.f32 %v93, %v305
    %v361 = vmul.f32 %v94, %v309
    %v362 = vmul.f32 %v95, %v305
    %v363 = vmul.f32 %v96, %v309
    %v364 = vmul.f32 %v97, %v305
    %v365 = vmul.f32 %v98, %v309
    %v366 = vmul.f32 %v99, %v305
    %v367 = vmul.f32 %v100, %v309
    %v368 = vmul.f32 %v101, %v305
    %v369 = vmul.f32 %v102, %v309
    %v370 = vmul.f32 %v103, %v305
    %v371 = vmul.f32 %v104, %v309
    %v372 = vmul.f32 %v105, %v305
    %v373 = vmul.f32 %v106, %v309
    %v374 = vmul.f32 %v107, %v305
    %v375 = vmul.f32 %v108, %v309
    %v376 = vmul.f32 %v109, %v305
    %v377 = vmul.f32 %v110, %v309
    %v378 = vmul.f32 %v111, %v305
    %v379 = vmul.f32 %v112, %v309
    %v380 = vmul.f32 %v113, %v305
    %v381 = vmul.f32 %v114, %v309
    %v382 = vmul.f32 %v115, %v305
    %v383 = vmul.f32 %v116, %v309
    %v384 = vmul.f32 %v117, %v305
    %v385 = vmul.f32 %v118, %v309
    %v386 = vmul.f32 %v119, %v305
    %v387 = vmul.f32 %v120, %v309
    %v388 = vmul.f32 %v121, %v305
    %v389 = vmul.f32 %v122, %v309
    %v390 = vmul.f32 %v123, %v305
    %v391 = vmul.f32 %v124, %v309
    %v392 = vmul.f32 %v125, %v305
    %v393 = vmul.f32 %v126, %v309
    %v394 = vmul.f32 %v127, %v305
    %v395 = vmul.f32 %v128, %v309
    %v396 = vmul.f32 %v129, %v305
    %v397 = vmul.f32 %v130, %v309
    %v398 = vmul.f32 %v131, %v305
    %v399 = vmul.f32 %v132, %v309
    %v400 = vmul.f32 %v133, %v305
    %v401 = vmul.f32 %v134, %v309
    %v402 = vmul.f32 %v135, %v305
    %v403 = vmul.f32 %v136, %v309
    %v404 = vmul.f32 %v137, %v305
    %v405 = vmul.f32 %v138, %v309
    %v406 = vmul.f32 %v139, %v305
    %v407 = vmul.f32 %v140, %v309
    %v408 = vmul.f32 %v141, %v305
    %v409 = vmul.f32 %v142, %v309
    %v410 = vmul.f32 %v143, %v305
    %v411 = vmul.f32 %v144, %v309
    %v412 = vmul.f32 %v145, %v305
    %v413 = vmul.f32 %v146, %v309
    %v414 = vmul.f32 %v147, %v305
    %v415 = vmul.f32 %v148, %v309
    %v416 = vmul.f32 %v149, %v305
    %v417 = vmul.f32 %v150, %v309
    %v418 = vmul.f32 %v151, %v305
    %v419 = vmul.f32 %v152, %v309
    %v420 = vmul.f32 %v153, %v305
    %v421 = vmul.f32 %v154, %v309
    %v422 = vmul.f32 %v155, %v305
    %v423 = vmul.f32 %v156, %v309
    %v424 = vmul.f32 %v157, %v305
    %v425 = vmul.f32 %v158, %v309
    %v426 = vmul.f32 %v159, %v305
    %v427 = vmul.f32 %v160, %v309
    %v428 = vmul.f32 %v161, %v305
    %v429 = vmul.f32 %v162, %v309
    %v430 = vmul.f32 %v163, %v305
    %v431 = vmul.f32 %v164, %v309
    %v432 = vmul.f32 %v165, %v305
    %v433 = vmul.f32 %v166, %v309
    %v434 = vmul.f32 %v167, %v305
    %v435 = vmul.f32 %v168, %v309
    %v436 = vmul.f32 %v169, %v305
    %v437 = vmul.f32 %v170, %v309
    %v438 = vmul.f32 %v171, %v305
    %v439 = vmul.f32 %v172, %v309
    %v440 = vmul.f32 %v173, %v305
    %v441 = vmul.f32 %v174, %v309
    %v442 = vmul.f32 %v175, %v305
    %v443 = vmul.f32 %v176, %v309
    %v444 = vmul.f32 %v177, %v305
    %v445 = vmul.f32 %v178, %v309
    %v446 = vmul.f32 %v179, %v305
    %v447 = vmul.f32 %v180, %v309
    %v448 = vmul.f32 %v181, %v305
    %v449 = vmul.f32 %v182, %v309
    %v450 = vmul.f32 %v183, %v305
    %v451 = vmul.f32 %v184, %v309
    %v452 = vmul.f32 %v185, %v305
    %v453 = vmul.f32 %v186, %v309
    %v454 = vmul.f32 %v187, %v305
    %v455 = vmul.f32 %v188, %v309
    %v456 = vmul.f32 %v189, %v305
    %v457 = vmul.f32 %v190, %v309
    %v458 = vmul.f32 %v191, %v305
    %v459 = vmul.f32 %v192, %v309
    %v460 = vmul.f32 %v193, %v305
    %v461 = vmul.f32 %v194, %v309
    %v462 = vmul.f32 %v195, %v305
    %v463 = vmul.f32 %v196, %v309
    %v464 = vmul.f32 %v197, %v305
    %v465 = vmul.f32 %v198, %v309
    %v466 = vmul.f32 %v199, %v305
    %v467 = vmul.f32 %v200, %v309
    %v468 = vmul.f32 %v201, %v305
    %v469 = vmul.f32 %v202, %v309
    %v470 = vmul.f32 %v203, %v305
    %v471 = vmul.f32 %v204, %v309
    %v472 = vmul.f32 %v205, %v305
    %v473 = vmul.f32 %v206, %v309
    %v474 = vmul.f32 %v207, %v305
    %v475 = vmul.f32 %v208, %v309
    %v476 = vmul.f32 %v209, %v305
    %v477 = vmul.f32 %v210, %v309
    %v478 = vmul.f32 %v211, %v305
    %v479 = vmul.f32 %v212, %v309
    %v480 = vmul.f32 %v213, %v305
    %v481 = vmul.f32 %v214, %v309
    %v482 = vmul.f32 %v215, %v305
    %v483 = vmul.f32 %v216, %v309
    %v484 = vmul.f32 %v217, %v305
    %v485 = vmul.f32 %v218, %v309
    %v486 = vmul.f32 %v219, %v305
    %v487 = vmul.f32 %v220, %v309
    %v488 = vmul.f32 %v221, %v305
    %v489 = vmul.f32 %v222, %v309
    %v490 = vmul.f32 %v223, %v305
    %v491 = vmul.f32 %v224, %v309
    %v492 = vmul.f32 %v225, %v305
    %v493 = vmul.f32 %v226, %v309
    %v494 = vmul.f32 %v227, %v305
    %v495 = vmul.f32 %v228, %v309
    %v496 = vmul.f32 %v229, %v305
    %v497 = vmul.f32 %v230, %v309
    %v498 = vmul.f32 %v231, %v305
    %v499 = vmul.f32 %v232, %v309
    %v500 = vmul.f32 %v233, %v305
    %v501 = vmul.f32 %v234, %v309
    %v502 = vmul.f32 %v235, %v305
    %v503 = vmul.f32 %v236, %v309
    %v504 = vmul.f32 %v237, %v305
    %v505 = vmul.f32 %v238, %v309
    %v506 = vmul.f32 %v239, %v305
    %v507 = vmul.f32 %v240, %v309
    %v508 = vmul.f32 %v241, %v305
    %v509 = vmul.f32 %v242, %v309
    %v510 = vmul.f32 %v243, %v305
    %v511 = vmul.f32 %v244, %v309
    %v512 = vmul.f32 %v245, %v305
    %v513 = vmul.f32 %v246, %v309
    %v514 = vmul.f32 %v247, %v305
    %v515 = vmul.f32 %v248, %v309
    %v516 = vmul.f32 %v249, %v305
    %v517 = vmul.f32 %v250, %v309
    %v518 = vmul.f32 %v251, %v305
    %v519 = vmul.f32 %v252, %v309
    %v520 = vmul.f32 %v253, %v305
    %v521 = vmul.f32 %v254, %v309
    %v522 = vmul.f32 %v255, %v305
    %v523 = vmul.f32 %v256, %v309
    %v524 = vmul.f32 %v257, %v305
    %v525 = vmul.f32 %v258, %v309
    %v526 = vmul.f32 %v259, %v305
    %v527 = vmul.f32 %v260, %v309
    %v528 = vmul.f32 %v261, %v305
    %v529 = vmul.f32 %v262, %v309
    %v530 = vmul.f32 %v263, %v305
    %v531 = vmul.f32 %v264, %v309
    %v532 = vmul.f32 %v265, %v305
    %v533 = vmul.f32 %v266, %v309
    %v534 = vmul.f32 %v267, %v305
    %v535 = vmul.f32 %v268, %v309
    %v536 = vmul.f32 %v269, %v305
    %v537 = vmul.f32 %v270, %v309
    %v538 = vmul.f32 %v271, %v305
    %v539 = vmul.f32 %v272, %v309
    %v540 = vmul.f32 %v273, %v305
    %v541 = vmul.f32 %v274, %v309
    %v542 = vmul.f32 %v275, %v305
    %v543 = vmul.f32 %v276, %v309
    %v544 = vmul.f32 %v277, %v305
    %v545 = vmul.f32 %v278, %v309
    %v546 = vmul.f32 %v279, %v305
    %v547 = vmul.f32 %v280, %v309
    %v548 = vmul.f32 %v281, %v305
    %v549 = vmul.f32 %v282, %v309
    %v550 = vmul.f32 %v283, %v305
    %v551 = vmul.f32 %v284, %v309
    %v552 = vmul.f32 %v285, %v305
    %v553 = vmul.f32 %v286, %v309
    %v554 = vmul.f32 %v287, %v305
    %v555 = vmul.f32 %v288, %v309
    %v556 = vmul.f32 %v289, %v305
    %v557 = vmul.f32 %v290, %v309
    %v558 = vmul.f32 %v291, %v305
    %v559 = vmul.f32 %v292, %v309
    %v560 = vmul.f32 %v293, %v305
    %v561 = vmul.f32 %v294, %v309
    %v562 = vmul.f32 %v295, %v305
    %v563 = vmul.f32 %v296, %v309
    %v564 = vmul.f32 %v297, %v305
    %v565 = vmul.f32 %v298, %v309
    %v566 = vmul.f32 %v299, %v305
    %v567 = vmul.f32 %v300, %v309
    %568 = vst [vmem:[#allocation7] sm:$0xff] %v312
    %569 = vst [vmem:[#allocation7 + $0x8] sm:$0xff] %v313
    %570 = vst [vmem:[#allocation7 + $0x10] sm:$0xff] %v314
    %571 = vst [vmem:[#allocation7 + $0x18] sm:$0xff] %v315
    %572 = vst [vmem:[#allocation7 + $0x20] sm:$0xff] %v316
    %573 = vst [vmem:[#allocation7 + $0x28] sm:$0xff] %v317
    %574 = vst [vmem:[#allocation7 + $0x30] sm:$0xff] %v318
    %575 = vst [vmem:[#allocation7 + $0x38] sm:$0xff] %v319
    %576 = vst [vmem:[#allocation7 + $0x40] sm:$0xff] %v320
    %577 = vst [vmem:[#allocation7 + $0x48] sm:$0xff] %v321
    %578 = vst [vmem:[#allocation7 + $0x50] sm:$0xff] %v322
    %579 = vst [vmem:[#allocation7 + $0x58] sm:$0xff] %v323
    %580 = vst [vmem:[#allocation7 + $0x60] sm:$0xff] %v324
    %581 = vst [vmem:[#allocation7 + $0x68] sm:$0xff] %v325
    %582 = vst [vmem:[#allocation7 + $0x70] sm:$0xff] %v326
    %583 = vst [vmem:[#allocation7 + $0x78] sm:$0xff] %v327
    %584 = vst [vmem:[#allocation7 + $0x80] sm:$0xff] %v328
    %585 = vst [vmem:[#allocation7 + $0x88] sm:$0xff] %v329
    %586 = vst [vmem:[#allocation7 + $0x90] sm:$0xff] %v330
    %587 = vst [vmem:[#allocation7 + $0x98] sm:$0xff] %v331
    %588 = vst [vmem:[#allocation7 + $0xa0] sm:$0xff] %v332
    %589 = vst [vmem:[#allocation7 + $0xa8] sm:$0xff] %v333
    %590 = vst [vmem:[#allocation7 + $0xb0] sm:$0xff] %v334
    %591 = vst [vmem:[#allocation7 + $0xb8] sm:$0xff] %v335
    %592 = vst [vmem:[#allocation7 + $0xc0] sm:$0xff] %v336
    %593 = vst [vmem:[#allocation7 + $0xc8] sm:$0xff] %v337
    %594 = vst [vmem:[#allocation7 + $0xd0] sm:$0xff] %v338
    %595 = vst [vmem:[#allocation7 + $0xd8] sm:$0xff] %v339
    %596 = vst [vmem:[#allocation7 + $0xe0] sm:$0xff] %v340
    %597 = vst [vmem:[#allocation7 + $0xe8] sm:$0xff] %v341
    %598 = vst [vmem:[#allocation7 + $0xf0] sm:$0xff] %v342
    %599 = vst [vmem:[#allocation7 + $0xf8] sm:$0xff] %v343
    %600 = vst [vmem:[#allocation7 + $0x100] sm:$0xff] %v344
    %601 = vst [vmem:[#allocation7 + $0x108] sm:$0xff] %v345
    %602 = vst [vmem:[#allocation7 + $0x110] sm:$0xff] %v346
    %603 = vst [vmem:[#allocation7 + $0x118] sm:$0xff] %v347
    %604 = vst [vmem:[#allocation7 + $0x120] sm:$0xff] %v348
    %605 = vst [vmem:[#allocation7 + $0x128] sm:$0xff] %v349
    %606 = vst [vmem:[#allocation7 + $0x130] sm:$0xff] %v350
    %607 = vst [vmem:[#allocation7 + $0x138] sm:$0xff] %v351
    %608 = vst [vmem:[#allocation7 + $0x140] sm:$0xff] %v352
    %609 = vst [vmem:[#allocation7 + $0x148] sm:$0xff] %v353
    %610 = vst [vmem:[#allocation7 + $0x150] sm:$0xff] %v354
    %611 = vst [vmem:[#allocation7 + $0x158] sm:$0xff] %v355
    %612 = vst [vmem:[#allocation7 + $0x160] sm:$0xff] %v356
    %613 = vst [vmem:[#allocation7 + $0x168] sm:$0xff] %v357
    %614 = vst [vmem:[#allocation7 + $0x170] sm:$0xff] %v358
    %615 = vst [vmem:[#allocation7 + $0x178] sm:$0xff] %v359
    %616 = vst [vmem:[#allocation7 + $0x180] sm:$0xff] %v360
    %617 = vst [vmem:[#allocation7 + $0x188] sm:$0xff] %v361
    %618 = vst [vmem:[#allocation7 + $0x190] sm:$0xff] %v362
    %619 = vst [vmem:[#allocation7 + $0x198] sm:$0xff] %v363
    %620 = vst [vmem:[#allocation7 + $0x1a0] sm:$0xff] %v364
    %621 = vst [vmem:[#allocation7 + $0x1a8] sm:$0xff] %v365
    %622 = vst [vmem:[#allocation7 + $0x1b0] sm:$0xff] %v366
    %623 = vst [vmem:[#allocation7 + $0x1b8] sm:$0xff] %v367
    %624 = vst [vmem:[#allocation7 + $0x1c0] sm:$0xff] %v368
    %625 = vst [vmem:[#allocation7 + $0x1c8] sm:$0xff] %v369
    %626 = vst [vmem:[#allocation7 + $0x1d0] sm:$0xff] %v370
    %627 = vst [vmem:[#allocation7 + $0x1d8] sm:$0xff] %v371
    %628 = vst [vmem:[#allocation7 + $0x1e0] sm:$0xff] %v372
    %629 = vst [vmem:[#allocation7 + $0x1e8] sm:$0xff] %v373
    %630 = vst [vmem:[#allocation7 + $0x1f0] sm:$0xff] %v374
    %631 = vst [vmem:[#allocation7 + $0x1f8] sm:$0xff] %v375
    %632 = vst [vmem:[#allocation7 + $0x200] sm:$0xff] %v376
    %633 = vst [vmem:[#allocation7 + $0x208] sm:$0xff] %v377
    %634 = vst [vmem:[#allocation7 + $0x210] sm:$0xff] %v378
    %635 = vst [vmem:[#allocation7 + $0x218] sm:$0xff] %v379
    %636 = vst [vmem:[#allocation7 + $0x220] sm:$0xff] %v380
    %637 = vst [vmem:[#allocation7 + $0x228] sm:$0xff] %v381
    %638 = vst [vmem:[#allocation7 + $0x230] sm:$0xff] %v382
    %639 = vst [vmem:[#allocation7 + $0x238] sm:$0xff] %v383
    %640 = vst [vmem:[#allocation7 + $0x240] sm:$0xff] %v384
    %641 = vst [vmem:[#allocation7 + $0x248] sm:$0xff] %v385
    %642 = vst [vmem:[#allocation7 + $0x250] sm:$0xff] %v386
    %643 = vst [vmem:[#allocation7 + $0x258] sm:$0xff] %v387
    %644 = vst [vmem:[#allocation7 + $0x260] sm:$0xff] %v388
    %645 = vst [vmem:[#allocation7 + $0x268] sm:$0xff] %v389
    %646 = vst [vmem:[#allocation7 + $0x270] sm:$0xff] %v390
    %647 = vst [vmem:[#allocation7 + $0x278] sm:$0xff] %v391
    %648 = vst [vmem:[#allocation7 + $0x280] sm:$0xff] %v392
    %649 = vst [vmem:[#allocation7 + $0x288] sm:$0xff] %v393
    %650 = vst [vmem:[#allocation7 + $0x290] sm:$0xff] %v394
    %651 = vst [vmem:[#allocation7 + $0x298] sm:$0xff] %v395
    %652 = vst [vmem:[#allocation7 + $0x2a0] sm:$0xff] %v396
    %653 = vst [vmem:[#allocation7 + $0x2a8] sm:$0xff] %v397
    %654 = vst [vmem:[#allocation7 + $0x2b0] sm:$0xff] %v398
    %655 = vst [vmem:[#allocation7 + $0x2b8] sm:$0xff] %v399
    %656 = vst [vmem:[#allocation7 + $0x2c0] sm:$0xff] %v400
    %657 = vst [vmem:[#allocation7 + $0x2c8] sm:$0xff] %v401
    %658 = vst [vmem:[#allocation7 + $0x2d0] sm:$0xff] %v402
    %659 = vst [vmem:[#allocation7 + $0x2d8] sm:$0xff] %v403
    %660 = vst [vmem:[#allocation7 + $0x2e0] sm:$0xff] %v404
    %661 = vst [vmem:[#allocation7 + $0x2e8] sm:$0xff] %v405
    %662 = vst [vmem:[#allocation7 + $0x2f0] sm:$0xff] %v406
    %663 = vst [vmem:[#allocation7 + $0x2f8] sm:$0xff] %v407
    %664 = vst [vmem:[#allocation7 + $0x300] sm:$0xff] %v408
    %665 = vst [vmem:[#allocation7 + $0x308] sm:$0xff] %v409
    %666 = vst [vmem:[#allocation7 + $0x310] sm:$0xff] %v410
    %667 = vst [vmem:[#allocation7 + $0x318] sm:$0xff] %v411
    %668 = vst [vmem:[#allocation7 + $0x320] sm:$0xff] %v412
    %669 = vst [vmem:[#allocation7 + $0x328] sm:$0xff] %v413
    %670 = vst [vmem:[#allocation7 + $0x330] sm:$0xff] %v414
    %671 = vst [vmem:[#allocation7 + $0x338] sm:$0xff] %v415
    %672 = vst [vmem:[#allocation7 + $0x340] sm:$0xff] %v416
    %673 = vst [vmem:[#allocation7 + $0x348] sm:$0xff] %v417
    %674 = vst [vmem:[#allocation7 + $0x350] sm:$0xff] %v418
    %675 = vst [vmem:[#allocation7 + $0x358] sm:$0xff] %v419
    %676 = vst [vmem:[#allocation7 + $0x360] sm:$0xff] %v420
    %677 = vst [vmem:[#allocation7 + $0x368] sm:$0xff] %v421
    %678 = vst [vmem:[#allocation7 + $0x370] sm:$0xff] %v422
    %679 = vst [vmem:[#allocation7 + $0x378] sm:$0xff] %v423
    %680 = vst [vmem:[#allocation7 + $0x380] sm:$0xff] %v424
    %681 = vst [vmem:[#allocation7 + $0x388] sm:$0xff] %v425
    %682 = vst [vmem:[#allocation7 + $0x390] sm:$0xff] %v426
    %683 = vst [vmem:[#allocation7 + $0x398] sm:$0xff] %v427
    %684 = vst [vmem:[#allocation7 + $0x3a0] sm:$0xff] %v428
    %685 = vst [vmem:[#allocation7 + $0x3a8] sm:$0xff] %v429
    %686 = vst [vmem:[#allocation7 + $0x3b0] sm:$0xff] %v430
    %687 = vst [vmem:[#allocation7 + $0x3b8] sm:$0xff] %v431
    %688 = vst [vmem:[#allocation7 + $0x3c0] sm:$0xff] %v432
    %689 = vst [vmem:[#allocation7 + $0x3c8] sm:$0xff] %v433
    %690 = vst [vmem:[#allocation7 + $0x3d0] sm:$0xff] %v434
    %691 = vst [vmem:[#allocation7 + $0x3d8] sm:$0xff] %v435
    %692 = vst [vmem:[#allocation7 + $0x3e0] sm:$0xff] %v436
    %693 = vst [vmem:[#allocation7 + $0x3e8] sm:$0xff] %v437
    %694 = vst [vmem:[#allocation7 + $0x3f0] sm:$0xff] %v438
    %695 = vst [vmem:[#allocation7 + $0x3f8] sm:$0xff] %v439
    %696 = vst [vmem:[#allocation7 + $0x400] sm:$0xff] %v440
    %697 = vst [vmem:[#allocation7 + $0x408] sm:$0xff] %v441
    %698 = vst [vmem:[#allocation7 + $0x410] sm:$0xff] %v442
    %699 = vst [vmem:[#allocation7 + $0x418] sm:$0xff] %v443
    %700 = vst [vmem:[#allocation7 + $0x420] sm:$0xff] %v444
    %701 = vst [vmem:[#allocation7 + $0x428] sm:$0xff] %v445
    %702 = vst [vmem:[#allocation7 + $0x430] sm:$0xff] %v446
    %703 = vst [vmem:[#allocation7 + $0x438] sm:$0xff] %v447
    %704 = vst [vmem:[#allocation7 + $0x440] sm:$0xff] %v448
    %705 = vst [vmem:[#allocation7 + $0x448] sm:$0xff] %v449
    %706 = vst [vmem:[#allocation7 + $0x450] sm:$0xff] %v450
    %707 = vst [vmem:[#allocation7 + $0x458] sm:$0xff] %v451
    %708 = vst [vmem:[#allocation7 + $0x460] sm:$0xff] %v452
    %709 = vst [vmem:[#allocation7 + $0x468] sm:$0xff] %v453
    %710 = vst [vmem:[#allocation7 + $0x470] sm:$0xff] %v454
    %711 = vst [vmem:[#allocation7 + $0x478] sm:$0xff] %v455
    %712 = vst [vmem:[#allocation7 + $0x480] sm:$0xff] %v456
    %713 = vst [vmem:[#allocation7 + $0x488] sm:$0xff] %v457
    %714 = vst [vmem:[#allocation7 + $0x490] sm:$0xff] %v458
    %715 = vst [vmem:[#allocation7 + $0x498] sm:$0xff] %v459
    %716 = vst [vmem:[#allocation7 + $0x4a0] sm:$0xff] %v460
    %717 = vst [vmem:[#allocation7 + $0x4a8] sm:$0xff] %v461
    %718 = vst [vmem:[#allocation7 + $0x4b0] sm:$0xff] %v462
    %719 = vst [vmem:[#allocation7 + $0x4b8] sm:$0xff] %v463
    %720 = vst [vmem:[#allocation7 + $0x4c0] sm:$0xff] %v464
    %721 = vst [vmem:[#allocation7 + $0x4c8] sm:$0xff] %v465
    %722 = vst [vmem:[#allocation7 + $0x4d0] sm:$0xff] %v466
    %723 = vst [vmem:[#allocation7 + $0x4d8] sm:$0xff] %v467
    %724 = vst [vmem:[#allocation7 + $0x4e0] sm:$0xff] %v468
    %725 = vst [vmem:[#allocation7 + $0x4e8] sm:$0xff] %v469
    %726 = vst [vmem:[#allocation7 + $0x4f0] sm:$0xff] %v470
    %727 = vst [vmem:[#allocation7 + $0x4f8] sm:$0xff] %v471
    %728 = vst [vmem:[#allocation7 + $0x500] sm:$0xff] %v472
    %729 = vst [vmem:[#allocation7 + $0x508] sm:$0xff] %v473
    %730 = vst [vmem:[#allocation7 + $0x510] sm:$0xff] %v474
    %731 = vst [vmem:[#allocation7 + $0x518] sm:$0xff] %v475
    %732 = vst [vmem:[#allocation7 + $0x520] sm:$0xff] %v476
    %733 = vst [vmem:[#allocation7 + $0x528] sm:$0xff] %v477
    %734 = vst [vmem:[#allocation7 + $0x530] sm:$0xff] %v478
    %735 = vst [vmem:[#allocation7 + $0x538] sm:$0xff] %v479
    %736 = vst [vmem:[#allocation7 + $0x540] sm:$0xff] %v480
    %737 = vst [vmem:[#allocation7 + $0x548] sm:$0xff] %v481
    %738 = vst [vmem:[#allocation7 + $0x550] sm:$0xff] %v482
    %739 = vst [vmem:[#allocation7 + $0x558] sm:$0xff] %v483
    %740 = vst [vmem:[#allocation7 + $0x560] sm:$0xff] %v484
    %741 = vst [vmem:[#allocation7 + $0x568] sm:$0xff] %v485
    %742 = vst [vmem:[#allocation7 + $0x570] sm:$0xff] %v486
    %743 = vst [vmem:[#allocation7 + $0x578] sm:$0xff] %v487
    %744 = vst [vmem:[#allocation7 + $0x580] sm:$0xff] %v488
    %745 = vst [vmem:[#allocation7 + $0x588] sm:$0xff] %v489
    %746 = vst [vmem:[#allocation7 + $0x590] sm:$0xff] %v490
    %747 = vst [vmem:[#allocation7 + $0x598] sm:$0xff] %v491
    %748 = vst [vmem:[#allocation7 + $0x5a0] sm:$0xff] %v492
    %749 = vst [vmem:[#allocation7 + $0x5a8] sm:$0xff] %v493
    %750 = vst [vmem:[#allocation7 + $0x5b0] sm:$0xff] %v494
    %751 = vst [vmem:[#allocation7 + $0x5b8] sm:$0xff] %v495
    %752 = vst [vmem:[#allocation7 + $0x5c0] sm:$0xff] %v496
    %753 = vst [vmem:[#allocation7 + $0x5c8] sm:$0xff] %v497
    %754 = vst [vmem:[#allocation7 + $0x5d0] sm:$0xff] %v498
    %755 = vst [vmem:[#allocation7 + $0x5d8] sm:$0xff] %v499
    %756 = vst [vmem:[#allocation7 + $0x5e0] sm:$0xff] %v500
    %757 = vst [vmem:[#allocation7 + $0x5e8] sm:$0xff] %v501
    %758 = vst [vmem:[#allocation7 + $0x5f0] sm:$0xff] %v502
    %759 = vst [vmem:[#allocation7 + $0x5f8] sm:$0xff] %v503
    %760 = vst [vmem:[#allocation7 + $0x600] sm:$0xff] %v504
    %761 = vst [vmem:[#allocation7 + $0x608] sm:$0xff] %v505
    %762 = vst [vmem:[#allocation7 + $0x610] sm:$0xff] %v506
    %763 = vst [vmem:[#allocation7 + $0x618] sm:$0xff] %v507
    %764 = vst [vmem:[#allocation7 + $0x620] sm:$0xff] %v508
    %765 = vst [vmem:[#allocation7 + $0x628] sm:$0xff] %v509
    %766 = vst [vmem:[#allocation7 + $0x630] sm:$0xff] %v510
    %767 = vst [vmem:[#allocation7 + $0x638] sm:$0xff] %v511
    %768 = vst [vmem:[#allocation7 + $0x640] sm:$0xff] %v512
    %769 = vst [vmem:[#allocation7 + $0x648] sm:$0xff] %v513
    %770 = vst [vmem:[#allocation7 + $0x650] sm:$0xff] %v514
    %771 = vst [vmem:[#allocation7 + $0x658] sm:$0xff] %v515
    %772 = vst [vmem:[#allocation7 + $0x660] sm:$0xff] %v516
    %773 = vst [vmem:[#allocation7 + $0x668] sm:$0xff] %v517
    %774 = vst [vmem:[#allocation7 + $0x670] sm:$0xff] %v518
    %775 = vst [vmem:[#allocation7 + $0x678] sm:$0xff] %v519
    %776 = vst [vmem:[#allocation7 + $0x680] sm:$0xff] %v520
    %777 = vst [vmem:[#allocation7 + $0x688] sm:$0xff] %v521
    %778 = vst [vmem:[#allocation7 + $0x690] sm:$0xff] %v522
    %779 = vst [vmem:[#allocation7 + $0x698] sm:$0xff] %v523
    %780 = vst [vmem:[#allocation7 + $0x6a0] sm:$0xff] %v524
    %781 = vst [vmem:[#allocation7 + $0x6a8] sm:$0xff] %v525
    %782 = vst [vmem:[#allocation7 + $0x6b0] sm:$0xff] %v526
    %783 = vst [vmem:[#allocation7 + $0x6b8] sm:$0xff] %v527
    %784 = vst [vmem:[#allocation7 + $0x6c0] sm:$0xff] %v528
    %785 = vst [vmem:[#allocation7 + $0x6c8] sm:$0xff] %v529
    %786 = vst [vmem:[#allocation7 + $0x6d0] sm:$0xff] %v530
    %787 = vst [vmem:[#allocation7 + $0x6d8] sm:$0xff] %v531
    %788 = vst [vmem:[#allocation7 + $0x6e0] sm:$0xff] %v532
    %789 = vst [vmem:[#allocation7 + $0x6e8] sm:$0xff] %v533
    %790 = vst [vmem:[#allocation7 + $0x6f0] sm:$0xff] %v534
    %791 = vst [vmem:[#allocation7 + $0x6f8] sm:$0xff] %v535
    %792 = vst [vmem:[#allocation7 + $0x700] sm:$0xff] %v536
    %793 = vst [vmem:[#allocation7 + $0x708] sm:$0xff] %v537
    %794 = vst [vmem:[#allocation7 + $0x710] sm:$0xff] %v538
    %795 = vst [vmem:[#allocation7 + $0x718] sm:$0xff] %v539
    %796 = vst [vmem:[#allocation7 + $0x720] sm:$0xff] %v540
    %797 = vst [vmem:[#allocation7 + $0x728] sm:$0xff] %v541
    %798 = vst [vmem:[#allocation7 + $0x730] sm:$0xff] %v542
    %799 = vst [vmem:[#allocation7 + $0x738] sm:$0xff] %v543
    %800 = vst [vmem:[#allocation7 + $0x740] sm:$0xff] %v544
    %801 = vst [vmem:[#allocation7 + $0x748] sm:$0xff] %v545
    %802 = vst [vmem:[#allocation7 + $0x750] sm:$0xff] %v546
    %803 = vst [vmem:[#allocation7 + $0x758] sm:$0xff] %v547
    %804 = vst [vmem:[#allocation7 + $0x760] sm:$0xff] %v548
    %805 = vst [vmem:[#allocation7 + $0x768] sm:$0xff] %v549
    %806 = vst [vmem:[#allocation7 + $0x770] sm:$0xff] %v550
    %807 = vst [vmem:[#allocation7 + $0x778] sm:$0xff] %v551
    %808 = vst [vmem:[#allocation7 + $0x780] sm:$0xff] %v552
    %809 = vst [vmem:[#allocation7 + $0x788] sm:$0xff] %v553
    %810 = vst [vmem:[#allocation7 + $0x790] sm:$0xff] %v554
    %811 = vst [vmem:[#allocation7 + $0x798] sm:$0xff] %v555
    %812 = vst [vmem:[#allocation7 + $0x7a0] sm:$0xff] %v556
    %813 = vst [vmem:[#allocation7 + $0x7a8] sm:$0xff] %v557
    %814 = vst [vmem:[#allocation7 + $0x7b0] sm:$0xff] %v558
    %815 = vst [vmem:[#allocation7 + $0x7b8] sm:$0xff] %v559
    %816 = vst [vmem:[#allocation7 + $0x7c0] sm:$0xff] %v560
    %817 = vst [vmem:[#allocation7 + $0x7c8] sm:$0xff] %v561
    %818 = vst [vmem:[#allocation7 + $0x7d0] sm:$0xff] %v562
    %819 = vst [vmem:[#allocation7 + $0x7d8] sm:$0xff] %v563
    %820 = vst [vmem:[#allocation7 + $0x7e0] sm:$0xff] %v564
    %821 = vst [vmem:[#allocation7 + $0x7e8] sm:$0xff] %v565
    %822 = vst [vmem:[#allocation7 + $0x7f0] sm:$0xff] %v566
    %823 = vst [vmem:[#allocation7 + $0x7f8] sm:$0xff] %v567
    // Predicated region
    $region18: #{tpu_custom_call.1} parent=1 // pred_check
      _
    $region19: #{tpu_custom_call.1} parent=1 // pred_check_branch
      %825 = sbr.rel (0) target = $region21
    $region20: #{tpu_custom_call.1} parent=1 // pred_region
      %s827 = ssub.s32 32768, 32768
      %828 = vsyncadd [#allocation4], %s827
      %s829 = sshll.u32 [#allocation7], 4
      %s830 = int_to_ptr.vmem [resolvable:$true] %s829
      %835 = dma.vmem_to_hbm [thread:$0]  %s830, 32768, %s2, [#allocation4], 256, 256, 16
    $region21: #{tpu_custom_call.1} parent=1 // pred_fallthru
      _
    // Predicated region
    $region22: #{tpu_custom_call.1} parent=1 // pred_check
      _
    $region23: #{tpu_custom_call.1} parent=1 // pred_check_branch
      %837 = sbr.rel (0) target = $region25
    $region24: #{tpu_custom_call.1} parent=1 // pred_region
      %838 = dma.done [#allocation4], 32768
    $region25: #{tpu_custom_call.1} parent=1 // pred_fallthru
      _
    %839 = vsyncpa [#allocation3], 1
    %840 = vsyncpa [#allocation6], 1
    %841 = vsyncpa [#allocation4], 1

</llo_original>
